<compile_context>
chip_gen: v6e
topology: v6e:2x2x1
jax: 0.10.0
libtpu: 0.0.40
codegen_flags: <defaults>
</compile_context>

<pallas_src>
import jax
import jax.numpy as jnp
from jax import lax
from jax.experimental import pallas as pl
from jax.experimental.pallas import tpu as pltpu

EPS = 1e-5


def _bn(h, gamma, beta):
    """Training-mode BatchNorm1d: per-channel batch stats, biased variance.

    Centered-variance form (numerically robust) + rsqrt (EUP, off the VALU).
    """
    mean = jnp.mean(h, axis=0, keepdims=True)
    c = h - mean
    var = jnp.mean(c * c, axis=0, keepdims=True)
    return c * (gamma * lax.rsqrt(var + EPS)) + beta


def linear_res_kernel(x_ref, wa_ref, wb_ref, bn_ref, o_ref):
    n_out = o_ref.shape[1]

    x = x_ref[...]           # (N, n_in) f32
    wb = wb_ref[...]         # [w2 | w3] packed, bf16, (n_out, 2*n_out)
    bnp = bn_ref[...]        # (4, 2*n_out) f32 packed BN affine params

    # Stage 1 (lane dense, 2*n_out = 128 lanes):
    #   [linear1(x) | transform(x)] in one MXU pass, then one 128-wide BN.
    #   (b1 is dropped: it cancels against the BN mean subtraction.)
    hr = jnp.dot(x.astype(jnp.bfloat16), wa_ref[...],
                 preferred_element_type=jnp.float32)
    hr = _bn(hr, bnp[0:1, :], bnp[1:2, :])
    h = jnp.maximum(hr[:, :n_out], 0.0)     # linear1 path gets the ReLU
    r = hr[:, n_out:]                       # transform residual (no ReLU)

    # Stage 2: linear2 -> BN -> ReLU       (b2 dropped, cancels in BN)
    h = jnp.dot(h.astype(jnp.bfloat16), wb[:, :n_out],
                preferred_element_type=jnp.float32)
    h = jnp.maximum(_bn(h, bnp[2:3, :n_out], bnp[3:4, :n_out]), 0.0)

    # Stage 3: linear3 -> BN               (b3 dropped, cancels in BN)
    h = jnp.dot(h.astype(jnp.bfloat16), wb[:, n_out:],
                preferred_element_type=jnp.float32)
    h = _bn(h, bnp[2:3, n_out:], bnp[3:4, n_out:])

    # Residual add + final ReLU.
    o_ref[...] = jnp.maximum(h + r, 0.0)


def linear_res_forward(x, p):
    N, n_in = x.shape
    n_out = p["w1"].shape[1]

    # ---- host-side operand packing (pure layout prep, no extra kernel math) ----
    # Fused first-stage weight [linear1 | transform] -> (n_in, 2*n_out), bf16.
    wa = jnp.concatenate([p["w1"], p["wt"]], axis=1).astype(jnp.bfloat16)
    # linear2 / linear3 packed side by side -> (n_out, 2*n_out), bf16.
    wb = jnp.concatenate([p["w2"], p["w3"]], axis=1).astype(jnp.bfloat16)
    # All BN affine params in one (4, 2*n_out) f32 operand:
    #   row 0 = [g1 | gt], row 1 = [be1 | bet], row 2 = [g2 | g3], row 3 = [be2 | be3]
    bn = jnp.concatenate(
        [jnp.concatenate([p["g1"], p["gt"]], axis=1),
         jnp.concatenate([p["be1"], p["bet"]], axis=1),
         jnp.concatenate([p["g2"], p["g3"]], axis=1),
         jnp.concatenate([p["be2"], p["be3"]], axis=1)],
        axis=0).astype(jnp.float32)
    # b1/b2/b3 intentionally not passed: exact no-ops under training-mode BN.

    vmem = pl.BlockSpec(memory_space=pltpu.MemorySpace.VMEM)
    return pl.pallas_call(
        linear_res_kernel,
        out_shape=jax.ShapeDtypeStruct((N, n_out), jnp.float32),
        in_specs=[vmem, vmem, vmem, vmem],
        out_specs=vmem,
        # Grid-less single invocation: the whole problem is VMEM-resident and
        # BN needs the full batch axis in one block.
        # TODO(synk): if N is ever tiled across a grid (or a second TensorCore
        # on v7x), BN becomes a cross-tile reduction -> switch to a two-pass
        # per-channel sum/sumsq scheme with the batch axis marked 'arbitrary'.
    )(x, wa, wb, bn)


def ref_forward(x, p, matmul_dtype=jnp.float32):
    """Pure-JAX reference mirroring the PyTorch forward (BN training mode).

    matmul_dtype=jnp.bfloat16 reproduces the kernel's bf16-MXU precision for a
    tight equivalence check; jnp.float32 is the exact PyTorch-semantics path.
    """
    def dot(a, b):
        return jnp.dot(a.astype(matmul_dtype), b.astype(matmul_dtype),
                       preferred_element_type=jnp.float32)

    def bn(h, g, b):
        m = h.mean(0, keepdims=True)
        v = h.var(0, keepdims=True)   # biased variance, as BN normalization uses
        return (h - m) / jnp.sqrt(v + EPS) * g + b

    h = dot(x, p["w1"]) + p["b1"]
    h = jax.nn.relu(bn(h, p["g1"], p["be1"]))
    h = dot(h, p["w2"]) + p["b2"]
    h = jax.nn.relu(bn(h, p["g2"], p["be2"]))
    h = dot(h, p["w3"]) + p["b3"]
    h = bn(h, p["g3"], p["be3"])
    r = bn(dot(x, p["wt"]), p["gt"], p["bet"])
    return jax.nn.relu(h + r)


def init_params(key, n_in, n_out):
    ks = jax.random.split(key, 16)
    u = lambda k, shape, bound: jax.random.uniform(
        k, shape, jnp.float32, -bound, bound
    )
    lim_in = 1.0 / jnp.sqrt(jnp.float32(n_in))
    lim_out = 1.0 / jnp.sqrt(jnp.float32(n_out))
    return {
        # linear weights stored as (in, out) == PyTorch weight.T
        "w1": u(ks[0], (n_in, n_out), lim_in),
        "b1": u(ks[1], (1, n_out), lim_in),
        "w2": u(ks[2], (n_out, n_out), lim_out),
        "b2": u(ks[3], (1, n_out), lim_out),
        "w3": u(ks[4], (n_out, n_out), lim_out),
        "b3": u(ks[5], (1, n_out), lim_out),
        "wt": u(ks[6], (n_in, n_out), lim_in),  # transform Linear, bias=False
        # BN affine params (randomized so the kernel path is non-trivial)
        "g1": 1.0 + 0.1 * u(ks[7], (1, n_out), 1.0),
        "be1": 0.1 * u(ks[8], (1, n_out), 1.0),
        "g2": 1.0 + 0.1 * u(ks[9], (1, n_out), 1.0),
        "be2": 0.1 * u(ks[10], (1, n_out), 1.0),
        "g3": 1.0 + 0.1 * u(ks[11], (1, n_out), 1.0),
        "be3": 0.1 * u(ks[12], (1, n_out), 1.0),
        "gt": 1.0 + 0.1 * u(ks[13], (1, n_out), 1.0),
        "bet": 0.1 * u(ks[14], (1, n_out), 1.0),
    }


if __name__ == "__main__":
    N, n_in, n_out = 16, 32, 64  # n_in != n_out -> transform branch is exercised

    key = jax.random.PRNGKey(0)
    kx, kp = jax.random.split(key)
    x = jax.random.normal(kx, (N, n_in), jnp.float32)
    params = init_params(kp, n_in, n_out)

    out = jax.block_until_ready(linear_res_forward(x, params))
    assert out.shape == (N, n_out)

    # Tight functional check: kernel vs a JAX reference that uses the same
    # bf16 matmul inputs (only f32 rounding / accumulation-order differences).
    ref_bf16 = ref_forward(x, params, matmul_dtype=jnp.bfloat16)
    assert jnp.allclose(out, ref_bf16, atol=2e-3, rtol=2e-3), (
        f"bf16-matched max abs err {float(jnp.max(jnp.abs(out - ref_bf16)))}"
    )

    # Fidelity check vs the pure-f32 PyTorch-semantics reference; the only
    # deviation is bf16 MXU input rounding (slightly amplified by the BN
    # renormalization), hence the looser tolerance.
    ref_f32 = ref_forward(x, params, matmul_dtype=jnp.float32)
    assert jnp.allclose(out, ref_f32, atol=5e-2, rtol=5e-2), (
        f"f32-reference max abs err {float(jnp.max(jnp.abs(out - ref_f32)))}"
    )

    print("KERNEL_OK")
</pallas_src>

<mosaic_0001>
module attributes {stable_mosaic.version = 11 : i64} {
  func.func @linear_res_kernel(%arg0: memref<16x32xf32, #tpu.memory_space<vmem>>, %arg1: memref<32x128xbf16, #tpu.memory_space<vmem>>, %arg2: memref<64x128xbf16, #tpu.memory_space<vmem>>, %arg3: memref<4x128xf32, #tpu.memory_space<vmem>>, %arg4: memref<16x64xf32, #tpu.memory_space<vmem>>) attributes {dimension_semantics = [], scalar_prefetch = 0 : i64, scratch_operands = 0 : i64, tpu.core_type = #tpu.core_type<tc>} {
    %c0 = arith.constant 0 : index
    %c0_0 = arith.constant 0 : index
    %0 = vector.load %arg0[%c0, %c0_0] : memref<16x32xf32, #tpu.memory_space<vmem>>, vector<16x32xf32>
    %c0_1 = arith.constant 0 : index
    %c0_2 = arith.constant 0 : index
    %1 = vector.load %arg2[%c0_1, %c0_2] : memref<64x128xbf16, #tpu.memory_space<vmem>>, vector<64x128xbf16>
    %c0_3 = arith.constant 0 : index
    %c0_4 = arith.constant 0 : index
    %2 = vector.load %arg3[%c0_3, %c0_4] : memref<4x128xf32, #tpu.memory_space<vmem>>, vector<4x128xf32>
    %3 = arith.truncf %0 : vector<16x32xf32> to vector<16x32xbf16>
    %c0_5 = arith.constant 0 : index
    %c0_6 = arith.constant 0 : index
    %4 = vector.load %arg1[%c0_5, %c0_6] : memref<32x128xbf16, #tpu.memory_space<vmem>>, vector<32x128xbf16>
    %cst = arith.constant dense<0.000000e+00> : vector<16x128xf32>
    %5 = tpu.matmul %3, %4, %cst {dimension_numbers = #tpu.dot_dimension_numbers<[1], [0], [0], [1], [0, 0, 1, 1], [], []>} : vector<16x32xbf16>, vector<32x128xbf16>, vector<16x128xf32> -> vector<16x128xf32>
    %6 = vector.extract_strided_slice %2 {offsets = [0, 0], sizes = [1, 128], strides = [1, 1]} : vector<4x128xf32> to vector<1x128xf32>
    %7 = vector.extract_strided_slice %2 {offsets = [1, 0], sizes = [1, 128], strides = [1, 1]} : vector<4x128xf32> to vector<1x128xf32>
    %cst_7 = arith.constant dense<0.000000e+00> : vector<128xf32>
    %8 = vector.multi_reduction <add>, %5, %cst_7 [0] : vector<16x128xf32> to vector<128xf32>
    %9 = vector.shape_cast %8 : vector<128xf32> to vector<1x128xf32>
    %cst_8 = arith.constant 1.600000e+01 : f32
    %10 = vector.broadcast %cst_8 : f32 to vector<1x128xf32>
    %11 = arith.divf %9, %10 : vector<1x128xf32>
    %12 = vector.broadcast %11 : vector<1x128xf32> to vector<16x128xf32>
    %13 = arith.subf %5, %12 : vector<16x128xf32>
    %14 = arith.mulf %13, %13 : vector<16x128xf32>
    %cst_9 = arith.constant dense<0.000000e+00> : vector<128xf32>
    %15 = vector.multi_reduction <add>, %14, %cst_9 [0] : vector<16x128xf32> to vector<128xf32>
    %16 = vector.shape_cast %15 : vector<128xf32> to vector<1x128xf32>
    %cst_10 = arith.constant 1.600000e+01 : f32
    %17 = vector.broadcast %cst_10 : f32 to vector<1x128xf32>
    %18 = arith.divf %16, %17 : vector<1x128xf32>
    %cst_11 = arith.constant 9.99999974E-6 : f32
    %19 = vector.broadcast %cst_11 : f32 to vector<1x128xf32>
    %20 = arith.addf %18, %19 : vector<1x128xf32>
    %21 = math.rsqrt %20 : vector<1x128xf32>
    %22 = arith.mulf %6, %21 : vector<1x128xf32>
    %23 = vector.broadcast %22 : vector<1x128xf32> to vector<16x128xf32>
    %24 = arith.mulf %13, %23 : vector<16x128xf32>
    %25 = vector.broadcast %7 : vector<1x128xf32> to vector<16x128xf32>
    %26 = arith.addf %24, %25 : vector<16x128xf32>
    %27 = vector.extract_strided_slice %26 {offsets = [0, 0], sizes = [16, 64], strides = [1, 1]} : vector<16x128xf32> to vector<16x64xf32>
    %cst_12 = arith.constant 0.000000e+00 : f32
    %28 = vector.broadcast %cst_12 : f32 to vector<16x64xf32>
    %29 = arith.maximumf %27, %28 : vector<16x64xf32>
    %30 = vector.extract_strided_slice %26 {offsets = [0, 64], sizes = [16, 64], strides = [1, 1]} : vector<16x128xf32> to vector<16x64xf32>
    %31 = arith.truncf %29 : vector<16x64xf32> to vector<16x64xbf16>
    %32 = vector.extract_strided_slice %1 {offsets = [0, 0], sizes = [64, 64], strides = [1, 1]} : vector<64x128xbf16> to vector<64x64xbf16>
    %cst_13 = arith.constant dense<0.000000e+00> : vector<16x64xf32>
    %33 = tpu.matmul %31, %32, %cst_13 {dimension_numbers = #tpu.dot_dimension_numbers<[1], [0], [0], [1], [0, 0, 1, 1], [], []>} : vector<16x64xbf16>, vector<64x64xbf16>, vector<16x64xf32> -> vector<16x64xf32>
    %34 = vector.extract_strided_slice %2 {offsets = [2, 0], sizes = [1, 64], strides = [1, 1]} : vector<4x128xf32> to vector<1x64xf32>
    %35 = vector.extract_strided_slice %2 {offsets = [3, 0], sizes = [1, 64], strides = [1, 1]} : vector<4x128xf32> to vector<1x64xf32>
    %cst_14 = arith.constant dense<0.000000e+00> : vector<64xf32>
    %36 = vector.multi_reduction <add>, %33, %cst_14 [0] : vector<16x64xf32> to vector<64xf32>
    %37 = vector.shape_cast %36 : vector<64xf32> to vector<1x64xf32>
    %cst_15 = arith.constant 1.600000e+01 : f32
    %38 = vector.broadcast %cst_15 : f32 to vector<1x64xf32>
    %39 = arith.divf %37, %38 : vector<1x64xf32>
    %40 = vector.broadcast %39 : vector<1x64xf32> to vector<16x64xf32>
    %41 = arith.subf %33, %40 : vector<16x64xf32>
    %42 = arith.mulf %41, %41 : vector<16x64xf32>
    %cst_16 = arith.constant dense<0.000000e+00> : vector<64xf32>
    %43 = vector.multi_reduction <add>, %42, %cst_16 [0] : vector<16x64xf32> to vector<64xf32>
    %44 = vector.shape_cast %43 : vector<64xf32> to vector<1x64xf32>
    %cst_17 = arith.constant 1.600000e+01 : f32
    %45 = vector.broadcast %cst_17 : f32 to vector<1x64xf32>
    %46 = arith.divf %44, %45 : vector<1x64xf32>
    %cst_18 = arith.constant 9.99999974E-6 : f32
    %47 = vector.broadcast %cst_18 : f32 to vector<1x64xf32>
    %48 = arith.addf %46, %47 : vector<1x64xf32>
    %49 = math.rsqrt %48 : vector<1x64xf32>
    %50 = arith.mulf %34, %49 : vector<1x64xf32>
    %51 = vector.broadcast %50 : vector<1x64xf32> to vector<16x64xf32>
    %52 = arith.mulf %41, %51 : vector<16x64xf32>
    %53 = vector.broadcast %35 : vector<1x64xf32> to vector<16x64xf32>
    %54 = arith.addf %52, %53 : vector<16x64xf32>
    %cst_19 = arith.constant 0.000000e+00 : f32
    %55 = vector.broadcast %cst_19 : f32 to vector<16x64xf32>
    %56 = arith.maximumf %54, %55 : vector<16x64xf32>
    %57 = arith.truncf %56 : vector<16x64xf32> to vector<16x64xbf16>
    %58 = vector.extract_strided_slice %1 {offsets = [0, 64], sizes = [64, 64], strides = [1, 1]} : vector<64x128xbf16> to vector<64x64xbf16>
    %cst_20 = arith.constant dense<0.000000e+00> : vector<16x64xf32>
    %59 = tpu.matmul %57, %58, %cst_20 {dimension_numbers = #tpu.dot_dimension_numbers<[1], [0], [0], [1], [0, 0, 1, 1], [], []>} : vector<16x64xbf16>, vector<64x64xbf16>, vector<16x64xf32> -> vector<16x64xf32>
    %60 = vector.extract_strided_slice %2 {offsets = [2, 64], sizes = [1, 64], strides = [1, 1]} : vector<4x128xf32> to vector<1x64xf32>
    %61 = vector.extract_strided_slice %2 {offsets = [3, 64], sizes = [1, 64], strides = [1, 1]} : vector<4x128xf32> to vector<1x64xf32>
    %cst_21 = arith.constant dense<0.000000e+00> : vector<64xf32>
    %62 = vector.multi_reduction <add>, %59, %cst_21 [0] : vector<16x64xf32> to vector<64xf32>
    %63 = vector.shape_cast %62 : vector<64xf32> to vector<1x64xf32>
    %cst_22 = arith.constant 1.600000e+01 : f32
    %64 = vector.broadcast %cst_22 : f32 to vector<1x64xf32>
    %65 = arith.divf %63, %64 : vector<1x64xf32>
    %66 = vector.broadcast %65 : vector<1x64xf32> to vector<16x64xf32>
    %67 = arith.subf %59, %66 : vector<16x64xf32>
    %68 = arith.mulf %67, %67 : vector<16x64xf32>
    %cst_23 = arith.constant dense<0.000000e+00> : vector<64xf32>
    %69 = vector.multi_reduction <add>, %68, %cst_23 [0] : vector<16x64xf32> to vector<64xf32>
    %70 = vector.shape_cast %69 : vector<64xf32> to vector<1x64xf32>
    %cst_24 = arith.constant 1.600000e+01 : f32
    %71 = vector.broadcast %cst_24 : f32 to vector<1x64xf32>
    %72 = arith.divf %70, %71 : vector<1x64xf32>
    %cst_25 = arith.constant 9.99999974E-6 : f32
    %73 = vector.broadcast %cst_25 : f32 to vector<1x64xf32>
    %74 = arith.addf %72, %73 : vector<1x64xf32>
    %75 = math.rsqrt %74 : vector<1x64xf32>
    %76 = arith.mulf %60, %75 : vector<1x64xf32>
    %77 = vector.broadcast %76 : vector<1x64xf32> to vector<16x64xf32>
    %78 = arith.mulf %67, %77 : vector<16x64xf32>
    %79 = vector.broadcast %61 : vector<1x64xf32> to vector<16x64xf32>
    %80 = arith.addf %78, %79 : vector<16x64xf32>
    %81 = arith.addf %80, %30 : vector<16x64xf32>
    %cst_26 = arith.constant 0.000000e+00 : f32
    %82 = vector.broadcast %cst_26 : f32 to vector<16x64xf32>
    %83 = arith.maximumf %81, %82 : vector<16x64xf32>
    %c0_27 = arith.constant 0 : index
    %c0_28 = arith.constant 0 : index
    %84 = vector.load %arg4[%c0_27, %c0_28] : memref<16x64xf32, #tpu.memory_space<vmem>>, vector<16x64xf32>
    tpu.vector_store %arg4[%c0_27, %c0_28], %83 {strides = array<i32>} : memref<16x64xf32, #tpu.memory_space<vmem>>, vector<16x64xf32>,
    return
  }
}

</mosaic_0001>

<llo_original>
// kernel: tpu_custom_call.1
$region0: #{tpu_custom_call.1}
  #allocation0 [shape = 'u32[]', space=smem, size = 0x4, offset = 0x4, fixed_abs, tag = 'smem constant byte address 0x4 - core index']
  #allocation1 [shape = 'u32[144,128]{1,0:T(1,128)}', space=vmem, size = 0x12000, scoped, tag = 'internal scratch']
  %s0 = inlined_call_operand.hbm [shape: f32[16,32], index: 0, kind: input, shape index: {}]
  %s1 = inlined_call_operand.hbm [shape: bf16[32,128], index: 1, kind: input, shape index: {}]
  %s2 = inlined_call_operand.hbm [shape: bf16[64,128], index: 2, kind: input, shape index: {}]
  %s3 = inlined_call_operand.vmem [shape: f32[4,128], index: 3, kind: input, shape index: {}]
  %s4 = inlined_call_operand.hbm [shape: f32[16,64], index: 4, kind: output, shape index: {}]
  %s5 = sld [smem:[#allocation0]]
  $region38: #{tpu_custom_call.1} parent=0
    _
  %s7 = ssub.s32 1, %s5
  %s8 = scalar_select 0, %s7, %s5
  $region1: #{tpu_custom_call.1} parent=0
    #allocation2 [shape = 'u8[8192]{0}', space=vmem, size = 0x2000, scoped, tag = 'input window, operand 0, single buffered']
    #allocation3 [shape = 's32[1]{0}', space=sflag, size = 0x4, scoped, tag = 'scoped memory for tpu_custom_call.1']
    #allocation4 [shape = 's32[1]{0}', space=sflag, size = 0x4, scoped, tag = 'scoped memory for tpu_custom_call.1']
    #allocation5 [shape = 'u8[8192]{0}', space=vmem, size = 0x2000, scoped, tag = 'input window, operand 1, single buffered']
    #allocation6 [shape = 's32[1]{0}', space=sflag, size = 0x4, scoped, tag = 'scoped memory for tpu_custom_call.1']
    #allocation7 [shape = 'u8[16384]{0}', space=vmem, size = 0x4000, scoped, tag = 'input window, operand 2, single buffered']
    #allocation8 [shape = 'u8[8192]{0}', space=vmem, size = 0x2000, scoped, tag = 'output window, operand 0, single buffered']
    %9 = vsyncpa [#allocation3], 0
    %10 = vsyncpa [#allocation6], 0
    %11 = vsyncpa [#allocation4], 0
    // Predicated region
    $region2: #{tpu_custom_call.1} parent=1 // pred_check
      _
    $region3: #{tpu_custom_call.1} parent=1 // pred_check_branch
      %13 = sbr.rel (0) target = $region5
    $region4: #{tpu_custom_call.1} parent=1 // pred_region
      %s15 = ssub.s32 256, 256
      %16 = vsyncadd [#allocation3], %s15
      %s17 = sshll.u32 [#allocation2], 4
      %s18 = int_to_ptr.vmem [resolvable:$true] %s17
      %23 = dma.hbm_to_vmem [thread:$0]  %s0, 256, %s18, [#allocation3], 128, 128, 8
    $region5: #{tpu_custom_call.1} parent=1 // pred_fallthru
      _
    // Predicated region
    $region6: #{tpu_custom_call.1} parent=1 // pred_check
      _
    $region7: #{tpu_custom_call.1} parent=1 // pred_check_branch
      %25 = sbr.rel (0) target = $region9
    $region8: #{tpu_custom_call.1} parent=1 // pred_region
      %s27 = ssub.s32 256, 256
      %28 = vsyncadd [#allocation6], %s27
      %s29 = sshll.u32 [#allocation5], 4
      %s30 = int_to_ptr.vmem [resolvable:$true] %s29
      %35 = dma.hbm_to_vmem [thread:$0]  %s1, 256, %s30, [#allocation6], 64, 64, 4
    $region9: #{tpu_custom_call.1} parent=1 // pred_fallthru
      _
    // Predicated region
    $region10: #{tpu_custom_call.1} parent=1 // pred_check
      _
    $region11: #{tpu_custom_call.1} parent=1 // pred_check_branch
      %37 = sbr.rel (0) target = $region13
    $region12: #{tpu_custom_call.1} parent=1 // pred_region
      %s39 = ssub.s32 512, 512
      %40 = vsyncadd [#allocation6], %s39
      %s41 = sshll.u32 [#allocation7], 4
      %s42 = int_to_ptr.vmem [resolvable:$true] %s41
      %47 = dma.hbm_to_vmem [thread:$0]  %s2, 512, %s42, [#allocation6], 64, 64, 4
    $region13: #{tpu_custom_call.1} parent=1 // pred_fallthru
      _
    // Predicated region
    $region14: #{tpu_custom_call.1} parent=1 // pred_check
      _
    $region15: #{tpu_custom_call.1} parent=1 // pred_check_branch
      %49 = sbr.rel (0) target = $region17
    $region16: #{tpu_custom_call.1} parent=1 // pred_region
      _
    $region17: #{tpu_custom_call.1} parent=1 // pred_fallthru
      _
    // Predicated region
    $region18: #{tpu_custom_call.1} parent=1 // pred_check
      _
    $region19: #{tpu_custom_call.1} parent=1 // pred_check_branch
      %51 = sbr.rel (0) target = $region21
    $region20: #{tpu_custom_call.1} parent=1 // pred_region
      %52 = dma.done [#allocation3], 256
    $region21: #{tpu_custom_call.1} parent=1 // pred_fallthru
      _
    // Predicated region
    $region22: #{tpu_custom_call.1} parent=1 // pred_check
      _
    $region23: #{tpu_custom_call.1} parent=1 // pred_check_branch
      %54 = sbr.rel (0) target = $region25
    $region24: #{tpu_custom_call.1} parent=1 // pred_region
      %55 = dma.done [#allocation6], 256
    $region25: #{tpu_custom_call.1} parent=1 // pred_fallthru
      _
    // Predicated region
    $region26: #{tpu_custom_call.1} parent=1 // pred_check
      _
    $region27: #{tpu_custom_call.1} parent=1 // pred_check_branch
      %57 = sbr.rel (0) target = $region29
    $region28: #{tpu_custom_call.1} parent=1 // pred_region
      %58 = dma.done [#allocation6], 512
    $region29: #{tpu_custom_call.1} parent=1 // pred_fallthru
      _
    %v60 = vld [vmem:[#allocation2] sm:$0xff]
    %v61 = vld [vmem:[#allocation2 + $0x8] sm:$0xff]
    %v62 = vld [vmem:[#allocation7] sm:$0xf]
    %v63 = vld [vmem:[#allocation7 + $0x4] sm:$0xf]
    %v64 = vld [vmem:[#allocation7 + $0x8] sm:$0xf]
    %v65 = vld [vmem:[#allocation7 + $0xc] sm:$0xf]
    %v66 = vld [vmem:[#allocation7 + $0x10] sm:$0xf]
    %v67 = vld [vmem:[#allocation7 + $0x14] sm:$0xf]
    %v68 = vld [vmem:[#allocation7 + $0x18] sm:$0xf]
    %v69 = vld [vmem:[#allocation7 + $0x1c] sm:$0xf]
    %v70 = vld [vmem:[%s3] sm:$0xf]
    %v71 = vpack.c.bf16 %v61, %v60
    %v72 = vld [vmem:[#allocation5] sm:$0xf]
    %v73 = vld [vmem:[#allocation5 + $0x4] sm:$0xf]
    %v74 = vld [vmem:[#allocation5 + $0x8] sm:$0xf]
    %v75 = vld [vmem:[#allocation5 + $0xc] sm:$0xf]
    %v80 = vunpack.c.l.b16 %v72
    %v81 = vunpack.c.l.b16 %v73
    %v82 = vunpack.c.l.b16 %v74
    %v83 = vunpack.c.l.b16 %v75
    %v84 = vpack.c.b16 %v81, %v80
    %v85 = vpack.c.b16 %v83, %v82
    %vm88 = vcmask 261120
    %v90 = vsel %vm88, %v71, 0
    %92 = vmatprep.subr.bf16.mxu0 0
    %93 = vmatpush1.bf16.msra.mxu0 0
    %94 = vmatprep.subr.bf16.mxu0 0
    %95 = vmatpush1.bf16.msra.mxu0 0
    %96 = vmatprep.subr.bf16.mxu0 0
    %97 = vmatpush1.bf16.msra.mxu0 0
    %98 = vmatprep.subr.bf16.mxu0 0
    %99 = vmatpush1.bf16.msra.mxu0 0
    %100 = vmatprep.subr.bf16.mxu0 0
    %101 = vmatpush1.bf16.msra.mxu0 0
    %102 = vmatprep.subr.bf16.mxu0 0
    %103 = vmatpush1.bf16.msra.mxu0 0
    %104 = vmatprep.subr.bf16.mxu0 0
    %105 = vmatpush1.bf16.msra.mxu0 %v85
    %106 = vmatprep.subr.bf16.mxu0 0
    %107 = vmatpush1.bf16.msra.mxu0 %v84
    %108 = vmatprep.subr.bf16.mxu0 0
    %109 = vmatpush2.bf16.msra.mxu0 0
    %110 = vmatprep.subr.bf16.mxu0 0
    %111 = vmatpush2.bf16.msra.mxu0 0
    %112 = vmatprep.subr.bf16.mxu0 0
    %113 = vmatpush2.bf16.msra.mxu0 0
    %114 = vmatprep.subr.bf16.mxu0 0
    %115 = vmatpush2.bf16.msra.mxu0 0
    %116 = vmatprep.subr.bf16.mxu0 0
    %117 = vmatpush2.bf16.msra.mxu0 0
    %118 = vmatprep.subr.bf16.mxu0 0
    %119 = vmatpush2.bf16.msra.mxu0 0
    %120 = vmatprep.subr.bf16.mxu0 0
    %121 = vmatpush2.bf16.msra.mxu0 0
    %122 = vmatprep.subr.bf16.mxu0 0
    %123 = vmatpush2.bf16.msra.mxu0 0
    %124 = vmatprep.mubr.bf16.mxu0 0
    %125 = vmatmul.mubr.bf16.gmra.mxu0 %v90
    %v126 = vpop.f32.mrf.mxu0
    %v127 = vadd.f32 0.0, %v126
    %v128 = vpop.f32.mrf.mxu0
    %v129 = vpop.f32.mrf.mxu0
    %v130 = vadd.f32 0.0, %v129
    %v131 = vpop.f32.mrf.mxu0
    %132 = vdwg.mxu0
    %v133 = vadd.f32 %v127, %v130
    %v134 = vrot.slane %v133, 4
    %v135 = vadd.f32 %v133, %v134
    %v136 = vrot.slane %v135, 2
    %v137 = vadd.f32 %v135, %v136
    %v138 = vrot.slane %v137, 1
    %v139 = vadd.f32 %v137, %v138
    %v140 = vrcp.pop 16.0
    %v141 = vmul.f32 %v139, %v140
    %v142 = vsub.f32 %v127, %v141
    %v143 = vsub.f32 %v130, %v141
    %v144 = vmul.f32 %v142, %v142
    %v145 = vmul.f32 %v143, %v143
    %v146 = vadd.f32 %v144, %v145
    %v147 = vrot.slane %v146, 4
    %v148 = vadd.f32 %v146, %v147
    %v149 = vrot.slane %v148, 2
    %v150 = vadd.f32 %v148, %v149
    %v151 = vrot.slane %v150, 1
    %v152 = vadd.f32 %v150, %v151
    %v153 = vmul.f32 %v152, %v140
    %v154 = vadd.f32 %v153, 1e-05
    %v155 = vrsqrt.pop %v154
    %v156 = vmul.f32 %v70, %v155
    %v157 = vlaneseq
    %v158 = vshrl.u32 %v157, 7
    %v159 = vsub.s32 0, %v158
    %v160 = vrot.slane %v156, %v159
    %v161 = vmul.f32 %v142, %v160
    %v162 = vmul.f32 %v143, %v160
    %v163 = vlaneseq
    %v164 = vshrl.u32 %v163, 7
    %v165 = vsub.s32 1, %v164
    %v166 = vrot.slane %v70, %v165
    %v167 = vadd.f32 %v161, %v166
    %v168 = vadd.f32 %v162, %v166
    %v169 = vmax.f32 %v167, 0.0
    %v170 = vmax.f32 %v168, 0.0
    %v171 = vpack.c.bf16 %v170, %v169
    %v180 = vunpack.c.l.b16 %v62
    %v181 = vunpack.c.l.b16 %v63
    %v182 = vunpack.c.l.b16 %v64
    %v183 = vunpack.c.l.b16 %v65
    %v184 = vunpack.c.l.b16 %v66
    %v185 = vunpack.c.l.b16 %v67
    %v186 = vunpack.c.l.b16 %v68
    %v187 = vunpack.c.l.b16 %v69
    %v188 = vpack.c.b16 %v181, %v180
    %v189 = vpack.c.b16 %v183, %v182
    %v190 = vpack.c.b16 %v185, %v184
    %v191 = vpack.c.b16 %v187, %v186
    %vm196 = vcmask 523264
    %v198 = vsel %vm196, %v171, 0
    %200 = vmatprep.subr.bf16.mxu0 0
    %201 = vmatpush1.bf16.msra.mxu0 0
    %202 = vmatprep.subr.bf16.mxu0 0
    %203 = vmatpush1.bf16.msra.mxu0 0
    %204 = vmatprep.subr.bf16.mxu0 0
    %205 = vmatpush1.bf16.msra.mxu0 0
    %206 = vmatprep.subr.bf16.mxu0 0
    %207 = vmatpush1.bf16.msra.mxu0 0
    %208 = vmatprep.subr.bf16.mxu0 0
    %209 = vmatpush1.bf16.msra.mxu0 %v191
    %210 = vmatprep.subr.bf16.mxu0 0
    %211 = vmatpush1.bf16.msra.mxu0 %v190
    %212 = vmatprep.subr.bf16.mxu0 0
    %213 = vmatpush1.bf16.msra.mxu0 %v189
    %214 = vmatprep.subr.bf16.mxu0 0
    %215 = vmatpush1.bf16.msra.mxu0 %v188
    %216 = vmatprep.subr.bf16.mxu0 0
    %217 = vmatpush2.bf16.msra.mxu0 0
    %218 = vmatprep.subr.bf16.mxu0 0
    %219 = vmatpush2.bf16.msra.mxu0 0
    %220 = vmatprep.subr.bf16.mxu0 0
    %221 = vmatpush2.bf16.msra.mxu0 0
    %222 = vmatprep.subr.bf16.mxu0 0
    %223 = vmatpush2.bf16.msra.mxu0 0
    %224 = vmatprep.subr.bf16.mxu0 0
    %225 = vmatpush2.bf16.msra.mxu0 0
    %226 = vmatprep.subr.bf16.mxu0 0
    %227 = vmatpush2.bf16.msra.mxu0 0
    %228 = vmatprep.subr.bf16.mxu0 0
    %229 = vmatpush2.bf16.msra.mxu0 0
    %230 = vmatprep.subr.bf16.mxu0 0
    %231 = vmatpush2.bf16.msra.mxu0 0
    %232 = vmatprep.mubr.bf16.mxu0 0
    %233 = vmatmul.mubr.bf16.gmra.mxu0 %v198
    %v234 = vpop.f32.mrf.mxu0
    %v235 = vadd.f32 0.0, %v234
    %v236 = vpop.f32.mrf.mxu0
    %v237 = vpop.f32.mrf.mxu0
    %v238 = vadd.f32 0.0, %v237
    %v239 = vpop.f32.mrf.mxu0
    %240 = vdwg.mxu0
    %v241 = vsel %vm196, %v235, 0.0
    %v242 = vsel %vm196, %v238, 0.0
    %v243 = vadd.f32 %v241, %v242
    %v244 = vrot.slane %v243, 4
    %v245 = vadd.f32 %v243, %v244
    %v246 = vrot.slane %v245, 2
    %v247 = vadd.f32 %v245, %v246
    %v248 = vrot.slane %v247, 1
    %v249 = vadd.f32 %v247, %v248
    %v250 = vmul.f32 %v249, %v140
    %v251 = vsub.f32 %v235, %v250
    %v252 = vsub.f32 %v238, %v250
    %v253 = vmul.f32 %v251, %v251
    %v254 = vmul.f32 %v252, %v252
    %v255 = vsel %vm196, %v253, 0.0
    %v256 = vsel %vm196, %v254, 0.0
    %v257 = vadd.f32 %v255, %v256
    %v258 = vrot.slane %v257, 4
    %v259 = vadd.f32 %v257, %v258
    %v260 = vrot.slane %v259, 2
    %v261 = vadd.f32 %v259, %v260
    %v262 = vrot.slane %v261, 1
    %v263 = vadd.f32 %v261, %v262
    %v264 = vmul.f32 %v263, %v140
    %v265 = vadd.f32 %v264, 1e-05
    %v266 = vrsqrt.pop %v265
    %v267 = vmul.f32 %v70, %v266
    %v268 = vlaneseq
    %v269 = vshrl.u32 %v268, 7
    %v270 = vsub.s32 2, %v269
    %v271 = vrot.slane %v267, %v270
    %v272 = vmul.f32 %v251, %v271
    %v273 = vmul.f32 %v252, %v271
    %v274 = vlaneseq
    %v275 = vshrl.u32 %v274, 7
    %v276 = vsub.s32 3, %v275
    %v277 = vrot.slane %v70, %v276
    %v278 = vadd.f32 %v272, %v277
    %v279 = vadd.f32 %v273, %v277
    %v280 = vmax.f32 %v278, 0.0
    %v281 = vmax.f32 %v279, 0.0
    %v282 = vpack.c.bf16 %v281, %v280
    %283 = vrot.lane.b32.xlu0 %v188, 64
    %v284 = vpop.permute.xlu0 %283
    %285 = vrot.lane.b32.xlu0 %v189, 64
    %v286 = vpop.permute.xlu0 %285
    %287 = vrot.lane.b32.xlu0 %v190, 64
    %v288 = vpop.permute.xlu0 %287
    %289 = vrot.lane.b32.xlu0 %v191, 64
    %v290 = vpop.permute.xlu0 %289
    %v296 = vsel %vm196, %v282, 0
    %298 = vmatprep.subr.bf16.mxu0 0
    %299 = vmatpush1.bf16.msra.mxu0 0
    %300 = vmatprep.subr.bf16.mxu0 0
    %301 = vmatpush1.bf16.msra.mxu0 0
    %302 = vmatprep.subr.bf16.mxu0 0
    %303 = vmatpush1.bf16.msra.mxu0 0
    %304 = vmatprep.subr.bf16.mxu0 0
    %305 = vmatpush1.bf16.msra.mxu0 0
    %306 = vmatprep.subr.bf16.mxu0 0
    %307 = vmatpush1.bf16.msra.mxu0 %v290
    %308 = vmatprep.subr.bf16.mxu0 0
    %309 = vmatpush1.bf16.msra.mxu0 %v288
    %310 = vmatprep.subr.bf16.mxu0 0
    %311 = vmatpush1.bf16.msra.mxu0 %v286
    %312 = vmatprep.subr.bf16.mxu0 0
    %313 = vmatpush1.bf16.msra.mxu0 %v284
    %314 = vmatprep.subr.bf16.mxu0 0
    %315 = vmatpush2.bf16.msra.mxu0 0
    %316 = vmatprep.subr.bf16.mxu0 0
    %317 = vmatpush2.bf16.msra.mxu0 0
    %318 = vmatprep.subr.bf16.mxu0 0
    %319 = vmatpush2.bf16.msra.mxu0 0
    %320 = vmatprep.subr.bf16.mxu0 0
    %321 = vmatpush2.bf16.msra.mxu0 0
    %322 = vmatprep.subr.bf16.mxu0 0
    %323 = vmatpush2.bf16.msra.mxu0 0
    %324 = vmatprep.subr.bf16.mxu0 0
    %325 = vmatpush2.bf16.msra.mxu0 0
    %326 = vmatprep.subr.bf16.mxu0 0
    %327 = vmatpush2.bf16.msra.mxu0 0
    %328 = vmatprep.subr.bf16.mxu0 0
    %329 = vmatpush2.bf16.msra.mxu0 0
    %330 = vmatprep.mubr.bf16.mxu0 0
    %331 = vmatmul.mubr.bf16.gmra.mxu0 %v296
    %v332 = vpop.f32.mrf.mxu0
    %v333 = vadd.f32 0.0, %v332
    %v334 = vpop.f32.mrf.mxu0
    %v335 = vpop.f32.mrf.mxu0
    %v336 = vadd.f32 0.0, %v335
    %v337 = vpop.f32.mrf.mxu0
    %338 = vdwg.mxu0
    %v339 = vsel %vm196, %v333, 0.0
    %v340 = vsel %vm196, %v336, 0.0
    %v341 = vadd.f32 %v339, %v340
    %v342 = vrot.slane %v341, 4
    %v343 = vadd.f32 %v341, %v342
    %v344 = vrot.slane %v343, 2
    %v345 = vadd.f32 %v343, %v344
    %v346 = vrot.slane %v345, 1
    %v347 = vadd.f32 %v345, %v346
    %v348 = vmul.f32 %v347, %v140
    %v349 = vsub.f32 %v333, %v348
    %v350 = vsub.f32 %v336, %v348
    %v351 = vmul.f32 %v349, %v349
    %v352 = vmul.f32 %v350, %v350
    %v353 = vsel %vm196, %v351, 0.0
    %v354 = vsel %vm196, %v352, 0.0
    %v355 = vadd.f32 %v353, %v354
    %v356 = vrot.slane %v355, 4
    %v357 = vadd.f32 %v355, %v356
    %v358 = vrot.slane %v357, 2
    %v359 = vadd.f32 %v357, %v358
    %v360 = vrot.slane %v359, 1
    %v361 = vadd.f32 %v359, %v360
    %v362 = vmul.f32 %v361, %v140
    %v363 = vadd.f32 %v362, 1e-05
    %v364 = vrsqrt.pop %v363
    %366 = vrot.lane.b32.xlu0 %v364, 64
    %v367 = vpop.permute.xlu0 %366
    %v369 = vmul.f32 %v70, %v367
    %v370 = vlaneseq
    %v371 = vshrl.u32 %v370, 7
    %v372 = vsub.s32 2, %v371
    %v373 = vrot.slane %v369, %v372
    %375 = vrot.lane.b32.xlu0 %v373, 64
    %v376 = vpop.permute.xlu0 %375
    %v378 = vmul.f32 %v349, %v376
    %v379 = vmul.f32 %v350, %v376
    %381 = vrot.lane.b32.xlu0 %v277, 64
    %v382 = vpop.permute.xlu0 %381
    %v384 = vadd.f32 %v378, %v382
    %v385 = vadd.f32 %v379, %v382
    %388 = vrot.lane.b32.xlu0 %v167, 64
    %v389 = vpop.permute.xlu0 %388
    %390 = vrot.lane.b32.xlu0 %v168, 64
    %v391 = vpop.permute.xlu0 %390
    %v394 = vadd.f32 %v384, %v389
    %v395 = vadd.f32 %v385, %v391
    %v396 = vmax.f32 %v394, 0.0
    %v397 = vmax.f32 %v395, 0.0
    %398 = vst.msk [vmem:[#allocation8] sm:$0xff] %vm196, %v396
    %399 = vst.msk [vmem:[#allocation8 + $0x8] sm:$0xff] %vm196, %v397
    // Predicated region
    $region30: #{tpu_custom_call.1} parent=1 // pred_check
      _
    $region31: #{tpu_custom_call.1} parent=1 // pred_check_branch
      %401 = sbr.rel (0) target = $region33
    $region32: #{tpu_custom_call.1} parent=1 // pred_region
      %s403 = ssub.s32 256, 256
      %404 = vsyncadd [#allocation4], %s403
      %s405 = sshll.u32 [#allocation8], 4
      %s406 = int_to_ptr.vmem [resolvable:$true] %s405
      %411 = dma.vmem_to_hbm [thread:$0]  %s406, 256, %s4, [#allocation4], 128, 128, 8
    $region33: #{tpu_custom_call.1} parent=1 // pred_fallthru
      _
    // Predicated region
    $region34: #{tpu_custom_call.1} parent=1 // pred_check
      _
    $region35: #{tpu_custom_call.1} parent=1 // pred_check_branch
      %413 = sbr.rel (0) target = $region37
    $region36: #{tpu_custom_call.1} parent=1 // pred_region
      %414 = dma.done [#allocation4], 256
    $region37: #{tpu_custom_call.1} parent=1 // pred_fallthru
      _
    %415 = vsyncpa [#allocation3], 1
    %416 = vsyncpa [#allocation6], 1
    %417 = vsyncpa [#allocation4], 1

</llo_original>
